<compile_context>
chip_gen: v6e
topology: v6e:2x2x1
jax: 0.10.0
libtpu: 0.0.40
codegen_flags: <defaults>
</compile_context>

<pallas_src>
import functools
import math

import jax
import jax.numpy as jnp
from jax.experimental import pallas as pl
from jax.experimental.pallas import tpu as pltpu


def rnn_block_kernel(x_ref, wih_t_ref, whh_t_ref, b_ref, out_ref, h_scratch,
                     *, t_blk, batch, hidden, use_vpu_recurrence):
    """One grid step == one block of `t_blk` consecutive RNN time steps.

    x_ref:     (t_blk*B, I)  flattened time-major input rows for this block
    wih_t_ref: (I, H)        W_ih^T (VMEM-resident across all blocks)
    whh_t_ref: (H, H)        W_hh^T (VMEM-resident across all blocks)
    b_ref:     (1, H)        b_ih + b_hh (fused once)
    out_ref:   (t_blk*B, H)  hidden states for this block (flattened time-major)
    h_scratch: (B, H) f32    carried hidden state (persists across grid steps)
    """
    blk = pl.program_id(0)

    @pl.when(blk == 0)
    def _():
        h_scratch[...] = jnp.zeros_like(h_scratch)

    # Block-level input projection: one large MXU matmul with the bias fused
    # once — entirely off the serial per-step dependency chain.
    p_blk = (
        jnp.dot(x_ref[...], wih_t_ref[...], preferred_element_type=jnp.float32)
        + b_ref[...]
    )                                                    # (t_blk*B, H) f32

    whh = whh_t_ref[...]                                 # hoisted weight load
    h = h_scratch[...]                                   # (B, H) f32

    # Serial recurrence, fully unrolled (t_blk is a compile-time constant) so
    # every slice index is static.
    hs = []
    for t in range(t_blk):
        lo = t * batch
        acc = p_blk[lo:lo + batch, :]
        if use_vpu_recurrence:
            # Small-H path: h @ W_hh^T as VPU broadcast-MACs over W_hh^T rows.
            # Keeps the MXU round trip off the serial critical path.
            for k in range(hidden):
                acc = acc + h[:, k:k + 1] * whh[k:k + 1, :]
        else:
            acc = acc + jnp.dot(h, whh, preferred_element_type=jnp.float32)
        h = jnp.tanh(acc)
        hs.append(h)

    # Single dense, sublane/lane-aligned block writeback (one unmasked store).
    block_out = jnp.concatenate(hs, axis=0)              # (t_blk*B, H) f32
    if block_out.dtype != out_ref.dtype:
        block_out = block_out.astype(out_ref.dtype)
    out_ref[...] = block_out

    h_scratch[...] = h                                   # carry to next block


def rnn_forward_pallas(x, w_ih, w_hh, b_ih, b_hh, t_blk_max=16,
                       vpu_hidden_threshold=32):
    """x: (T, B, I) time-major; weights per PyTorch convention:
       w_ih: (H, I), w_hh: (H, H), b_ih: (H,), b_hh: (H,)
       Returns (T * B, H), matching Modle.forward's x.view(-1, hidden_size)."""
    T, B, I = x.shape
    H = w_ih.shape[0]

    # Glue (outside the hot loop): pre-transpose weights, fuse biases.
    wih_t = jnp.asarray(w_ih, jnp.float32).T                         # (I, H)
    whh_t = jnp.asarray(w_hh, jnp.float32).T                         # (H, H)
    b = (jnp.asarray(b_ih, jnp.float32)
         + jnp.asarray(b_hh, jnp.float32)).reshape(1, H)             # (1, H)

    # Time-block size: amortize per-grid-step overhead; keep the block's leading
    # dim (t_blk * B) a multiple of 8 sublanes. Kept modest so the fully
    # unrolled loop / concatenated writeback stays within the vreg file.
    t_blk = max(1, min(T, t_blk_max))
    sub = 8 // math.gcd(B, 8)
    t_blk = ((t_blk + sub - 1) // sub) * sub
    n_blk = (T + t_blk - 1) // t_blk
    t_pad = n_blk * t_blk

    # Flatten time-major input to 2-D rows; pad trailing time steps with zeros
    # (padded steps come last, so real outputs are unaffected; pad is sliced off).
    x_flat = jnp.asarray(x, jnp.float32).reshape(T * B, I)
    if t_pad != T:
        x_flat = jnp.pad(x_flat, ((0, (t_pad - T) * B), (0, 0)))

    kernel = functools.partial(
        rnn_block_kernel, t_blk=t_blk, batch=B, hidden=H,
        use_vpu_recurrence=(H <= vpu_hidden_threshold))

    # Advisory cost estimate (lets XLA schedule neighbouring ops correctly).
    cost = pl.CostEstimate(
        flops=int(2 * T * B * (I + H) * H),
        transcendentals=int(T * B * H),
        bytes_accessed=int(4 * (T * B * I + T * B * H + I * H + H * H + H)),
    )

    # Explicit VMEM budget (tile-padded estimate, x2 headroom), clamped so it
    # never exceeds what v7x's 64 MiB/TC can back.
    def _pad(r, c):
        return ((r + 7) // 8) * 8 * ((c + 127) // 128) * 128
    vmem_needed = 4 * (2 * _pad(t_blk * B, I)       # double-buffered x blocks
                       + 2 * _pad(t_blk * B, H)     # double-buffered out blocks
                       + _pad(I, H) + _pad(H, H) + _pad(1, H)   # resident weights
                       + _pad(B, H)                 # hidden-state scratch
                       + 2 * _pad(t_blk * B, H))    # projection / staging values
    vmem_limit = int(min(48 * 1024 * 1024,
                         max(32 * 1024 * 1024, 2 * vmem_needed)))

    out = pl.pallas_call(
        kernel,
        out_shape=jax.ShapeDtypeStruct((t_pad * B, H), jnp.float32),
        grid_spec=pltpu.PrefetchScalarGridSpec(
            num_scalar_prefetch=0,
            grid=(n_blk,),
            in_specs=[
                pl.BlockSpec((t_blk * B, I), lambda i: (i, 0)),  # x block
                pl.BlockSpec((I, H), lambda i: (0, 0)),          # W_ih^T (resident)
                pl.BlockSpec((H, H), lambda i: (0, 0)),          # W_hh^T (resident)
                pl.BlockSpec((1, H), lambda i: (0, 0)),          # fused bias
            ],
            out_specs=pl.BlockSpec((t_blk * B, H), lambda i: (i, 0)),
            scratch_shapes=[pltpu.VMEM((B, H), jnp.float32)],    # carried hidden state
        ),
        compiler_params=pltpu.CompilerParams(
            # Sequential carry across time blocks -> must be "arbitrary".
            dimension_semantics=("arbitrary",),
            vmem_limit_bytes=vmem_limit,
        ),
        cost_estimate=cost,
    )(x_flat, wih_t, whh_t, b)

    return out[: T * B, :]


def rnn_forward_ref(x, w_ih, w_hh, b_ih, b_hh):
    """Pure-JAX reference (lax.scan) for correctness checking."""
    T, B, _ = x.shape
    H = w_ih.shape[0]

    def step(h, x_t):
        h_new = jnp.tanh(x_t @ w_ih.T + b_ih + h @ w_hh.T + b_hh)
        return h_new, h_new

    h0 = jnp.zeros((B, H), jnp.float32)
    _, hs = jax.lax.scan(step, h0, x.astype(jnp.float32))
    return hs.reshape(T * B, H)


if __name__ == "__main__":
    # Small shapes consistent with the module: num_layer=1, hidden_size=5.
    seq_len = 8
    batch_size = 2
    input_size = 4
    hidden_size = 5

    key = jax.random.PRNGKey(0)
    k_x, k_wih, k_whh, k_bih, k_bhh = jax.random.split(key, 5)

    # Deterministic parameter init mimicking PyTorch's U(-1/sqrt(H), 1/sqrt(H)).
    bound = 1.0 / (hidden_size ** 0.5)
    w_ih = jax.random.uniform(k_wih, (hidden_size, input_size), jnp.float32, -bound, bound)
    w_hh = jax.random.uniform(k_whh, (hidden_size, hidden_size), jnp.float32, -bound, bound)
    b_ih = jax.random.uniform(k_bih, (hidden_size,), jnp.float32, -bound, bound)
    b_hh = jax.random.uniform(k_bhh, (hidden_size,), jnp.float32, -bound, bound)

    # Time-major input, like torch.nn.RNN with batch_first=False.
    x = jax.random.normal(k_x, (seq_len, batch_size, input_size), jnp.float32)

    out = rnn_forward_pallas(x, w_ih, w_hh, b_ih, b_hh)
    out = jax.block_until_ready(out)

    ref = rnn_forward_ref(x, w_ih, w_hh, b_ih, b_hh)
    assert out.shape == (seq_len * batch_size, hidden_size)
    assert jnp.allclose(out, ref, atol=1e-5, rtol=1e-5), "mismatch vs JAX reference"

    print("KERNEL_OK")
</pallas_src>

<mosaic_0001>
module attributes {stable_mosaic.version = 11 : i64} {
  func.func @rnn_block_kernel(%arg0: i32, %arg1: memref<16x4xf32, #tpu.memory_space<vmem>>, %arg2: memref<4x5xf32, #tpu.memory_space<vmem>>, %arg3: memref<5x5xf32, #tpu.memory_space<vmem>>, %arg4: memref<1x5xf32, #tpu.memory_space<vmem>>, %arg5: memref<16x5xf32, #tpu.memory_space<vmem>>, %arg6: memref<2x5xf32, #tpu.memory_space<vmem>>) attributes {dimension_semantics = [#tpu.dimension_semantics<arbitrary>], iteration_bounds = array<i64: 1>, scalar_prefetch = 0 : i64, scratch_operands = 1 : i64, tpu.core_type = #tpu.core_type<tc>, window_params = [{transform_indices = @transform_0, window_bounds = array<i64: 16, 4>}, {pipeline_mode = #tpu.pipeline_mode<synchronous>, transform_indices = @transform_1, window_bounds = array<i64: 4, 5>}, {pipeline_mode = #tpu.pipeline_mode<synchronous>, transform_indices = @transform_2, window_bounds = array<i64: 5, 5>}, {pipeline_mode = #tpu.pipeline_mode<synchronous>, transform_indices = @transform_3, window_bounds = array<i64: 1, 5>}, {transform_indices = @transform_4, window_bounds = array<i64: 16, 5>}]} {
    %c0_i32 = arith.constant 0 : i32
    %0 = arith.cmpi eq, %arg0, %c0_i32 : i32
    %1 = arith.extui %0 : i1 to i32
    %c0_i32_0 = arith.constant 0 : i32
    %2 = arith.cmpi ne, %1, %c0_i32_0 : i32
    scf.if %2 {
      %cst_14 = arith.constant 0.000000e+00 : f32
      %270 = vector.broadcast %cst_14 : f32 to vector<2x5xf32>
      %c0_15 = arith.constant 0 : index
      %c0_16 = arith.constant 0 : index
      %271 = vector.load %arg6[%c0_15, %c0_16] : memref<2x5xf32, #tpu.memory_space<vmem>>, vector<2x5xf32>
      tpu.vector_store %arg6[%c0_15, %c0_16], %270 {strides = array<i32>} : memref<2x5xf32, #tpu.memory_space<vmem>>, vector<2x5xf32>,
    } else {
    }
    %c0 = arith.constant 0 : index
    %c0_1 = arith.constant 0 : index
    %3 = vector.load %arg1[%c0, %c0_1] : memref<16x4xf32, #tpu.memory_space<vmem>>, vector<16x4xf32>
    %c0_2 = arith.constant 0 : index
    %c0_3 = arith.constant 0 : index
    %4 = vector.load %arg2[%c0_2, %c0_3] : memref<4x5xf32, #tpu.memory_space<vmem>>, vector<4x5xf32>
    %cst = arith.constant dense<0.000000e+00> : vector<16x5xf32>
    %5 = tpu.matmul %3, %4, %cst {dimension_numbers = #tpu.dot_dimension_numbers<[1], [0], [0], [1], [0, 0, 1, 1], [], []>} : vector<16x4xf32>, vector<4x5xf32>, vector<16x5xf32> -> vector<16x5xf32>
    %c0_4 = arith.constant 0 : index
    %c0_5 = arith.constant 0 : index
    %6 = vector.load %arg4[%c0_4, %c0_5] : memref<1x5xf32, #tpu.memory_space<vmem>>, vector<1x5xf32>
    %7 = vector.broadcast %6 : vector<1x5xf32> to vector<16x5xf32>
    %8 = arith.addf %5, %7 : vector<16x5xf32>
    %c0_6 = arith.constant 0 : index
    %c0_7 = arith.constant 0 : index
    %9 = vector.load %arg3[%c0_6, %c0_7] : memref<5x5xf32, #tpu.memory_space<vmem>>, vector<5x5xf32>
    %c0_8 = arith.constant 0 : index
    %c0_9 = arith.constant 0 : index
    %10 = vector.load %arg6[%c0_8, %c0_9] : memref<2x5xf32, #tpu.memory_space<vmem>>, vector<2x5xf32>
    %11 = vector.extract_strided_slice %8 {offsets = [0, 0], sizes = [2, 5], strides = [1, 1]} : vector<16x5xf32> to vector<2x5xf32>
    %12 = vector.extract_strided_slice %10 {offsets = [0, 0], sizes = [2, 1], strides = [1, 1]} : vector<2x5xf32> to vector<2x1xf32>
    %13 = vector.extract_strided_slice %9 {offsets = [0, 0], sizes = [1, 5], strides = [1, 1]} : vector<5x5xf32> to vector<1x5xf32>
    %14 = vector.broadcast %12 : vector<2x1xf32> to vector<2x5xf32>
    %15 = vector.broadcast %13 : vector<1x5xf32> to vector<2x5xf32>
    %16 = arith.mulf %14, %15 : vector<2x5xf32>
    %17 = arith.addf %11, %16 : vector<2x5xf32>
    %18 = vector.extract_strided_slice %10 {offsets = [0, 1], sizes = [2, 1], strides = [1, 1]} : vector<2x5xf32> to vector<2x1xf32>
    %19 = vector.extract_strided_slice %9 {offsets = [1, 0], sizes = [1, 5], strides = [1, 1]} : vector<5x5xf32> to vector<1x5xf32>
    %20 = vector.broadcast %18 : vector<2x1xf32> to vector<2x5xf32>
    %21 = vector.broadcast %19 : vector<1x5xf32> to vector<2x5xf32>
    %22 = arith.mulf %20, %21 : vector<2x5xf32>
    %23 = arith.addf %17, %22 : vector<2x5xf32>
    %24 = vector.extract_strided_slice %10 {offsets = [0, 2], sizes = [2, 1], strides = [1, 1]} : vector<2x5xf32> to vector<2x1xf32>
    %25 = vector.extract_strided_slice %9 {offsets = [2, 0], sizes = [1, 5], strides = [1, 1]} : vector<5x5xf32> to vector<1x5xf32>
    %26 = vector.broadcast %24 : vector<2x1xf32> to vector<2x5xf32>
    %27 = vector.broadcast %25 : vector<1x5xf32> to vector<2x5xf32>
    %28 = arith.mulf %26, %27 : vector<2x5xf32>
    %29 = arith.addf %23, %28 : vector<2x5xf32>
    %30 = vector.extract_strided_slice %10 {offsets = [0, 3], sizes = [2, 1], strides = [1, 1]} : vector<2x5xf32> to vector<2x1xf32>
    %31 = vector.extract_strided_slice %9 {offsets = [3, 0], sizes = [1, 5], strides = [1, 1]} : vector<5x5xf32> to vector<1x5xf32>
    %32 = vector.broadcast %30 : vector<2x1xf32> to vector<2x5xf32>
    %33 = vector.broadcast %31 : vector<1x5xf32> to vector<2x5xf32>
    %34 = arith.mulf %32, %33 : vector<2x5xf32>
    %35 = arith.addf %29, %34 : vector<2x5xf32>
    %36 = vector.extract_strided_slice %10 {offsets = [0, 4], sizes = [2, 1], strides = [1, 1]} : vector<2x5xf32> to vector<2x1xf32>
    %37 = vector.extract_strided_slice %9 {offsets = [4, 0], sizes = [1, 5], strides = [1, 1]} : vector<5x5xf32> to vector<1x5xf32>
    %38 = vector.broadcast %36 : vector<2x1xf32> to vector<2x5xf32>
    %39 = vector.broadcast %37 : vector<1x5xf32> to vector<2x5xf32>
    %40 = arith.mulf %38, %39 : vector<2x5xf32>
    %41 = arith.addf %35, %40 : vector<2x5xf32>
    %42 = math.tanh %41 : vector<2x5xf32>
    %43 = vector.extract_strided_slice %8 {offsets = [2, 0], sizes = [2, 5], strides = [1, 1]} : vector<16x5xf32> to vector<2x5xf32>
    %44 = vector.extract_strided_slice %42 {offsets = [0, 0], sizes = [2, 1], strides = [1, 1]} : vector<2x5xf32> to vector<2x1xf32>
    %45 = vector.extract_strided_slice %9 {offsets = [0, 0], sizes = [1, 5], strides = [1, 1]} : vector<5x5xf32> to vector<1x5xf32>
    %46 = vector.broadcast %44 : vector<2x1xf32> to vector<2x5xf32>
    %47 = vector.broadcast %45 : vector<1x5xf32> to vector<2x5xf32>
    %48 = arith.mulf %46, %47 : vector<2x5xf32>
    %49 = arith.addf %43, %48 : vector<2x5xf32>
    %50 = vector.extract_strided_slice %42 {offsets = [0, 1], sizes = [2, 1], strides = [1, 1]} : vector<2x5xf32> to vector<2x1xf32>
    %51 = vector.extract_strided_slice %9 {offsets = [1, 0], sizes = [1, 5], strides = [1, 1]} : vector<5x5xf32> to vector<1x5xf32>
    %52 = vector.broadcast %50 : vector<2x1xf32> to vector<2x5xf32>
    %53 = vector.broadcast %51 : vector<1x5xf32> to vector<2x5xf32>
    %54 = arith.mulf %52, %53 : vector<2x5xf32>
    %55 = arith.addf %49, %54 : vector<2x5xf32>
    %56 = vector.extract_strided_slice %42 {offsets = [0, 2], sizes = [2, 1], strides = [1, 1]} : vector<2x5xf32> to vector<2x1xf32>
    %57 = vector.extract_strided_slice %9 {offsets = [2, 0], sizes = [1, 5], strides = [1, 1]} : vector<5x5xf32> to vector<1x5xf32>
    %58 = vector.broadcast %56 : vector<2x1xf32> to vector<2x5xf32>
    %59 = vector.broadcast %57 : vector<1x5xf32> to vector<2x5xf32>
    %60 = arith.mulf %58, %59 : vector<2x5xf32>
    %61 = arith.addf %55, %60 : vector<2x5xf32>
    %62 = vector.extract_strided_slice %42 {offsets = [0, 3], sizes = [2, 1], strides = [1, 1]} : vector<2x5xf32> to vector<2x1xf32>
    %63 = vector.extract_strided_slice %9 {offsets = [3, 0], sizes = [1, 5], strides = [1, 1]} : vector<5x5xf32> to vector<1x5xf32>
    %64 = vector.broadcast %62 : vector<2x1xf32> to vector<2x5xf32>
    %65 = vector.broadcast %63 : vector<1x5xf32> to vector<2x5xf32>
    %66 = arith.mulf %64, %65 : vector<2x5xf32>
    %67 = arith.addf %61, %66 : vector<2x5xf32>
    %68 = vector.extract_strided_slice %42 {offsets = [0, 4], sizes = [2, 1], strides = [1, 1]} : vector<2x5xf32> to vector<2x1xf32>
    %69 = vector.extract_strided_slice %9 {offsets = [4, 0], sizes = [1, 5], strides = [1, 1]} : vector<5x5xf32> to vector<1x5xf32>
    %70 = vector.broadcast %68 : vector<2x1xf32> to vector<2x5xf32>
    %71 = vector.broadcast %69 : vector<1x5xf32> to vector<2x5xf32>
    %72 = arith.mulf %70, %71 : vector<2x5xf32>
    %73 = arith.addf %67, %72 : vector<2x5xf32>
    %74 = math.tanh %73 : vector<2x5xf32>
    %75 = vector.extract_strided_slice %8 {offsets = [4, 0], sizes = [2, 5], strides = [1, 1]} : vector<16x5xf32> to vector<2x5xf32>
    %76 = vector.extract_strided_slice %74 {offsets = [0, 0], sizes = [2, 1], strides = [1, 1]} : vector<2x5xf32> to vector<2x1xf32>
    %77 = vector.extract_strided_slice %9 {offsets = [0, 0], sizes = [1, 5], strides = [1, 1]} : vector<5x5xf32> to vector<1x5xf32>
    %78 = vector.broadcast %76 : vector<2x1xf32> to vector<2x5xf32>
    %79 = vector.broadcast %77 : vector<1x5xf32> to vector<2x5xf32>
    %80 = arith.mulf %78, %79 : vector<2x5xf32>
    %81 = arith.addf %75, %80 : vector<2x5xf32>
    %82 = vector.extract_strided_slice %74 {offsets = [0, 1], sizes = [2, 1], strides = [1, 1]} : vector<2x5xf32> to vector<2x1xf32>
    %83 = vector.extract_strided_slice %9 {offsets = [1, 0], sizes = [1, 5], strides = [1, 1]} : vector<5x5xf32> to vector<1x5xf32>
    %84 = vector.broadcast %82 : vector<2x1xf32> to vector<2x5xf32>
    %85 = vector.broadcast %83 : vector<1x5xf32> to vector<2x5xf32>
    %86 = arith.mulf %84, %85 : vector<2x5xf32>
    %87 = arith.addf %81, %86 : vector<2x5xf32>
    %88 = vector.extract_strided_slice %74 {offsets = [0, 2], sizes = [2, 1], strides = [1, 1]} : vector<2x5xf32> to vector<2x1xf32>
    %89 = vector.extract_strided_slice %9 {offsets = [2, 0], sizes = [1, 5], strides = [1, 1]} : vector<5x5xf32> to vector<1x5xf32>
    %90 = vector.broadcast %88 : vector<2x1xf32> to vector<2x5xf32>
    %91 = vector.broadcast %89 : vector<1x5xf32> to vector<2x5xf32>
    %92 = arith.mulf %90, %91 : vector<2x5xf32>
    %93 = arith.addf %87, %92 : vector<2x5xf32>
    %94 = vector.extract_strided_slice %74 {offsets = [0, 3], sizes = [2, 1], strides = [1, 1]} : vector<2x5xf32> to vector<2x1xf32>
    %95 = vector.extract_strided_slice %9 {offsets = [3, 0], sizes = [1, 5], strides = [1, 1]} : vector<5x5xf32> to vector<1x5xf32>
    %96 = vector.broadcast %94 : vector<2x1xf32> to vector<2x5xf32>
    %97 = vector.broadcast %95 : vector<1x5xf32> to vector<2x5xf32>
    %98 = arith.mulf %96, %97 : vector<2x5xf32>
    %99 = arith.addf %93, %98 : vector<2x5xf32>
    %100 = vector.extract_strided_slice %74 {offsets = [0, 4], sizes = [2, 1], strides = [1, 1]} : vector<2x5xf32> to vector<2x1xf32>
    %101 = vector.extract_strided_slice %9 {offsets = [4, 0], sizes = [1, 5], strides = [1, 1]} : vector<5x5xf32> to vector<1x5xf32>
    %102 = vector.broadcast %100 : vector<2x1xf32> to vector<2x5xf32>
    %103 = vector.broadcast %101 : vector<1x5xf32> to vector<2x5xf32>
    %104 = arith.mulf %102, %103 : vector<2x5xf32>
    %105 = arith.addf %99, %104 : vector<2x5xf32>
    %106 = math.tanh %105 : vector<2x5xf32>
    %107 = vector.extract_strided_slice %8 {offsets = [6, 0], sizes = [2, 5], strides = [1, 1]} : vector<16x5xf32> to vector<2x5xf32>
    %108 = vector.extract_strided_slice %106 {offsets = [0, 0], sizes = [2, 1], strides = [1, 1]} : vector<2x5xf32> to vector<2x1xf32>
    %109 = vector.extract_strided_slice %9 {offsets = [0, 0], sizes = [1, 5], strides = [1, 1]} : vector<5x5xf32> to vector<1x5xf32>
    %110 = vector.broadcast %108 : vector<2x1xf32> to vector<2x5xf32>
    %111 = vector.broadcast %109 : vector<1x5xf32> to vector<2x5xf32>
    %112 = arith.mulf %110, %111 : vector<2x5xf32>
    %113 = arith.addf %107, %112 : vector<2x5xf32>
    %114 = vector.extract_strided_slice %106 {offsets = [0, 1], sizes = [2, 1], strides = [1, 1]} : vector<2x5xf32> to vector<2x1xf32>
    %115 = vector.extract_strided_slice %9 {offsets = [1, 0], sizes = [1, 5], strides = [1, 1]} : vector<5x5xf32> to vector<1x5xf32>
    %116 = vector.broadcast %114 : vector<2x1xf32> to vector<2x5xf32>
    %117 = vector.broadcast %115 : vector<1x5xf32> to vector<2x5xf32>
    %118 = arith.mulf %116, %117 : vector<2x5xf32>
    %119 = arith.addf %113, %118 : vector<2x5xf32>
    %120 = vector.extract_strided_slice %106 {offsets = [0, 2], sizes = [2, 1], strides = [1, 1]} : vector<2x5xf32> to vector<2x1xf32>
    %121 = vector.extract_strided_slice %9 {offsets = [2, 0], sizes = [1, 5], strides = [1, 1]} : vector<5x5xf32> to vector<1x5xf32>
    %122 = vector.broadcast %120 : vector<2x1xf32> to vector<2x5xf32>
    %123 = vector.broadcast %121 : vector<1x5xf32> to vector<2x5xf32>
    %124 = arith.mulf %122, %123 : vector<2x5xf32>
    %125 = arith.addf %119, %124 : vector<2x5xf32>
    %126 = vector.extract_strided_slice %106 {offsets = [0, 3], sizes = [2, 1], strides = [1, 1]} : vector<2x5xf32> to vector<2x1xf32>
    %127 = vector.extract_strided_slice %9 {offsets = [3, 0], sizes = [1, 5], strides = [1, 1]} : vector<5x5xf32> to vector<1x5xf32>
    %128 = vector.broadcast %126 : vector<2x1xf32> to vector<2x5xf32>
    %129 = vector.broadcast %127 : vector<1x5xf32> to vector<2x5xf32>
    %130 = arith.mulf %128, %129 : vector<2x5xf32>
    %131 = arith.addf %125, %130 : vector<2x5xf32>
    %132 = vector.extract_strided_slice %106 {offsets = [0, 4], sizes = [2, 1], strides = [1, 1]} : vector<2x5xf32> to vector<2x1xf32>
    %133 = vector.extract_strided_slice %9 {offsets = [4, 0], sizes = [1, 5], strides = [1, 1]} : vector<5x5xf32> to vector<1x5xf32>
    %134 = vector.broadcast %132 : vector<2x1xf32> to vector<2x5xf32>
    %135 = vector.broadcast %133 : vector<1x5xf32> to vector<2x5xf32>
    %136 = arith.mulf %134, %135 : vector<2x5xf32>
    %137 = arith.addf %131, %136 : vector<2x5xf32>
    %138 = math.tanh %137 : vector<2x5xf32>
    %139 = vector.extract_strided_slice %8 {offsets = [8, 0], sizes = [2, 5], strides = [1, 1]} : vector<16x5xf32> to vector<2x5xf32>
    %140 = vector.extract_strided_slice %138 {offsets = [0, 0], sizes = [2, 1], strides = [1, 1]} : vector<2x5xf32> to vector<2x1xf32>
    %141 = vector.extract_strided_slice %9 {offsets = [0, 0], sizes = [1, 5], strides = [1, 1]} : vector<5x5xf32> to vector<1x5xf32>
    %142 = vector.broadcast %140 : vector<2x1xf32> to vector<2x5xf32>
    %143 = vector.broadcast %141 : vector<1x5xf32> to vector<2x5xf32>
    %144 = arith.mulf %142, %143 : vector<2x5xf32>
    %145 = arith.addf %139, %144 : vector<2x5xf32>
    %146 = vector.extract_strided_slice %138 {offsets = [0, 1], sizes = [2, 1], strides = [1, 1]} : vector<2x5xf32> to vector<2x1xf32>
    %147 = vector.extract_strided_slice %9 {offsets = [1, 0], sizes = [1, 5], strides = [1, 1]} : vector<5x5xf32> to vector<1x5xf32>
    %148 = vector.broadcast %146 : vector<2x1xf32> to vector<2x5xf32>
    %149 = vector.broadcast %147 : vector<1x5xf32> to vector<2x5xf32>
    %150 = arith.mulf %148, %149 : vector<2x5xf32>
    %151 = arith.addf %145, %150 : vector<2x5xf32>
    %152 = vector.extract_strided_slice %138 {offsets = [0, 2], sizes = [2, 1], strides = [1, 1]} : vector<2x5xf32> to vector<2x1xf32>
    %153 = vector.extract_strided_slice %9 {offsets = [2, 0], sizes = [1, 5], strides = [1, 1]} : vector<5x5xf32> to vector<1x5xf32>
    %154 = vector.broadcast %152 : vector<2x1xf32> to vector<2x5xf32>
    %155 = vector.broadcast %153 : vector<1x5xf32> to vector<2x5xf32>
    %156 = arith.mulf %154, %155 : vector<2x5xf32>
    %157 = arith.addf %151, %156 : vector<2x5xf32>
    %158 = vector.extract_strided_slice %138 {offsets = [0, 3], sizes = [2, 1], strides = [1, 1]} : vector<2x5xf32> to vector<2x1xf32>
    %159 = vector.extract_strided_slice %9 {offsets = [3, 0], sizes = [1, 5], strides = [1, 1]} : vector<5x5xf32> to vector<1x5xf32>
    %160 = vector.broadcast %158 : vector<2x1xf32> to vector<2x5xf32>
    %161 = vector.broadcast %159 : vector<1x5xf32> to vector<2x5xf32>
    %162 = arith.mulf %160, %161 : vector<2x5xf32>
    %163 = arith.addf %157, %162 : vector<2x5xf32>
    %164 = vector.extract_strided_slice %138 {offsets = [0, 4], sizes = [2, 1], strides = [1, 1]} : vector<2x5xf32> to vector<2x1xf32>
    %165 = vector.extract_strided_slice %9 {offsets = [4, 0], sizes = [1, 5], strides = [1, 1]} : vector<5x5xf32> to vector<1x5xf32>
    %166 = vector.broadcast %164 : vector<2x1xf32> to vector<2x5xf32>
    %167 = vector.broadcast %165 : vector<1x5xf32> to vector<2x5xf32>
    %168 = arith.mulf %166, %167 : vector<2x5xf32>
    %169 = arith.addf %163, %168 : vector<2x5xf32>
    %170 = math.tanh %169 : vector<2x5xf32>
    %171 = vector.extract_strided_slice %8 {offsets = [10, 0], sizes = [2, 5], strides = [1, 1]} : vector<16x5xf32> to vector<2x5xf32>
    %172 = vector.extract_strided_slice %170 {offsets = [0, 0], sizes = [2, 1], strides = [1, 1]} : vector<2x5xf32> to vector<2x1xf32>
    %173 = vector.extract_strided_slice %9 {offsets = [0, 0], sizes = [1, 5], strides = [1, 1]} : vector<5x5xf32> to vector<1x5xf32>
    %174 = vector.broadcast %172 : vector<2x1xf32> to vector<2x5xf32>
    %175 = vector.broadcast %173 : vector<1x5xf32> to vector<2x5xf32>
    %176 = arith.mulf %174, %175 : vector<2x5xf32>
    %177 = arith.addf %171, %176 : vector<2x5xf32>
    %178 = vector.extract_strided_slice %170 {offsets = [0, 1], sizes = [2, 1], strides = [1, 1]} : vector<2x5xf32> to vector<2x1xf32>
    %179 = vector.extract_strided_slice %9 {offsets = [1, 0], sizes = [1, 5], strides = [1, 1]} : vector<5x5xf32> to vector<1x5xf32>
    %180 = vector.broadcast %178 : vector<2x1xf32> to vector<2x5xf32>
    %181 = vector.broadcast %179 : vector<1x5xf32> to vector<2x5xf32>
    %182 = arith.mulf %180, %181 : vector<2x5xf32>
    %183 = arith.addf %177, %182 : vector<2x5xf32>
    %184 = vector.extract_strided_slice %170 {offsets = [0, 2], sizes = [2, 1], strides = [1, 1]} : vector<2x5xf32> to vector<2x1xf32>
    %185 = vector.extract_strided_slice %9 {offsets = [2, 0], sizes = [1, 5], strides = [1, 1]} : vector<5x5xf32> to vector<1x5xf32>
    %186 = vector.broadcast %184 : vector<2x1xf32> to vector<2x5xf32>
    %187 = vector.broadcast %185 : vector<1x5xf32> to vector<2x5xf32>
    %188 = arith.mulf %186, %187 : vector<2x5xf32>
    %189 = arith.addf %183, %188 : vector<2x5xf32>
    %190 = vector.extract_strided_slice %170 {offsets = [0, 3], sizes = [2, 1], strides = [1, 1]} : vector<2x5xf32> to vector<2x1xf32>
    %191 = vector.extract_strided_slice %9 {offsets = [3, 0], sizes = [1, 5], strides = [1, 1]} : vector<5x5xf32> to vector<1x5xf32>
    %192 = vector.broadcast %190 : vector<2x1xf32> to vector<2x5xf32>
    %193 = vector.broadcast %191 : vector<1x5xf32> to vector<2x5xf32>
    %194 = arith.mulf %192, %193 : vector<2x5xf32>
    %195 = arith.addf %189, %194 : vector<2x5xf32>
    %196 = vector.extract_strided_slice %170 {offsets = [0, 4], sizes = [2, 1], strides = [1, 1]} : vector<2x5xf32> to vector<2x1xf32>
    %197 = vector.extract_strided_slice %9 {offsets = [4, 0], sizes = [1, 5], strides = [1, 1]} : vector<5x5xf32> to vector<1x5xf32>
    %198 = vector.broadcast %196 : vector<2x1xf32> to vector<2x5xf32>
    %199 = vector.broadcast %197 : vector<1x5xf32> to vector<2x5xf32>
    %200 = arith.mulf %198, %199 : vector<2x5xf32>
    %201 = arith.addf %195, %200 : vector<2x5xf32>
    %202 = math.tanh %201 : vector<2x5xf32>
    %203 = vector.extract_strided_slice %8 {offsets = [12, 0], sizes = [2, 5], strides = [1, 1]} : vector<16x5xf32> to vector<2x5xf32>
    %204 = vector.extract_strided_slice %202 {offsets = [0, 0], sizes = [2, 1], strides = [1, 1]} : vector<2x5xf32> to vector<2x1xf32>
    %205 = vector.extract_strided_slice %9 {offsets = [0, 0], sizes = [1, 5], strides = [1, 1]} : vector<5x5xf32> to vector<1x5xf32>
    %206 = vector.broadcast %204 : vector<2x1xf32> to vector<2x5xf32>
    %207 = vector.broadcast %205 : vector<1x5xf32> to vector<2x5xf32>
    %208 = arith.mulf %206, %207 : vector<2x5xf32>
    %209 = arith.addf %203, %208 : vector<2x5xf32>
    %210 = vector.extract_strided_slice %202 {offsets = [0, 1], sizes = [2, 1], strides = [1, 1]} : vector<2x5xf32> to vector<2x1xf32>
    %211 = vector.extract_strided_slice %9 {offsets = [1, 0], sizes = [1, 5], strides = [1, 1]} : vector<5x5xf32> to vector<1x5xf32>
    %212 = vector.broadcast %210 : vector<2x1xf32> to vector<2x5xf32>
    %213 = vector.broadcast %211 : vector<1x5xf32> to vector<2x5xf32>
    %214 = arith.mulf %212, %213 : vector<2x5xf32>
    %215 = arith.addf %209, %214 : vector<2x5xf32>
    %216 = vector.extract_strided_slice %202 {offsets = [0, 2], sizes = [2, 1], strides = [1, 1]} : vector<2x5xf32> to vector<2x1xf32>
    %217 = vector.extract_strided_slice %9 {offsets = [2, 0], sizes = [1, 5], strides = [1, 1]} : vector<5x5xf32> to vector<1x5xf32>
    %218 = vector.broadcast %216 : vector<2x1xf32> to vector<2x5xf32>
    %219 = vector.broadcast %217 : vector<1x5xf32> to vector<2x5xf32>
    %220 = arith.mulf %218, %219 : vector<2x5xf32>
    %221 = arith.addf %215, %220 : vector<2x5xf32>
    %222 = vector.extract_strided_slice %202 {offsets = [0, 3], sizes = [2, 1], strides = [1, 1]} : vector<2x5xf32> to vector<2x1xf32>
    %223 = vector.extract_strided_slice %9 {offsets = [3, 0], sizes = [1, 5], strides = [1, 1]} : vector<5x5xf32> to vector<1x5xf32>
    %224 = vector.broadcast %222 : vector<2x1xf32> to vector<2x5xf32>
    %225 = vector.broadcast %223 : vector<1x5xf32> to vector<2x5xf32>
    %226 = arith.mulf %224, %225 : vector<2x5xf32>
    %227 = arith.addf %221, %226 : vector<2x5xf32>
    %228 = vector.extract_strided_slice %202 {offsets = [0, 4], sizes = [2, 1], strides = [1, 1]} : vector<2x5xf32> to vector<2x1xf32>
    %229 = vector.extract_strided_slice %9 {offsets = [4, 0], sizes = [1, 5], strides = [1, 1]} : vector<5x5xf32> to vector<1x5xf32>
    %230 = vector.broadcast %228 : vector<2x1xf32> to vector<2x5xf32>
    %231 = vector.broadcast %229 : vector<1x5xf32> to vector<2x5xf32>
    %232 = arith.mulf %230, %231 : vector<2x5xf32>
    %233 = arith.addf %227, %232 : vector<2x5xf32>
    %234 = math.tanh %233 : vector<2x5xf32>
    %235 = vector.extract_strided_slice %8 {offsets = [14, 0], sizes = [2, 5], strides = [1, 1]} : vector<16x5xf32> to vector<2x5xf32>
    %236 = vector.extract_strided_slice %234 {offsets = [0, 0], sizes = [2, 1], strides = [1, 1]} : vector<2x5xf32> to vector<2x1xf32>
    %237 = vector.extract_strided_slice %9 {offsets = [0, 0], sizes = [1, 5], strides = [1, 1]} : vector<5x5xf32> to vector<1x5xf32>
    %238 = vector.broadcast %236 : vector<2x1xf32> to vector<2x5xf32>
    %239 = vector.broadcast %237 : vector<1x5xf32> to vector<2x5xf32>
    %240 = arith.mulf %238, %239 : vector<2x5xf32>
    %241 = arith.addf %235, %240 : vector<2x5xf32>
    %242 = vector.extract_strided_slice %234 {offsets = [0, 1], sizes = [2, 1], strides = [1, 1]} : vector<2x5xf32> to vector<2x1xf32>
    %243 = vector.extract_strided_slice %9 {offsets = [1, 0], sizes = [1, 5], strides = [1, 1]} : vector<5x5xf32> to vector<1x5xf32>
    %244 = vector.broadcast %242 : vector<2x1xf32> to vector<2x5xf32>
    %245 = vector.broadcast %243 : vector<1x5xf32> to vector<2x5xf32>
    %246 = arith.mulf %244, %245 : vector<2x5xf32>
    %247 = arith.addf %241, %246 : vector<2x5xf32>
    %248 = vector.extract_strided_slice %234 {offsets = [0, 2], sizes = [2, 1], strides = [1, 1]} : vector<2x5xf32> to vector<2x1xf32>
    %249 = vector.extract_strided_slice %9 {offsets = [2, 0], sizes = [1, 5], strides = [1, 1]} : vector<5x5xf32> to vector<1x5xf32>
    %250 = vector.broadcast %248 : vector<2x1xf32> to vector<2x5xf32>
    %251 = vector.broadcast %249 : vector<1x5xf32> to vector<2x5xf32>
    %252 = arith.mulf %250, %251 : vector<2x5xf32>
    %253 = arith.addf %247, %252 : vector<2x5xf32>
    %254 = vector.extract_strided_slice %234 {offsets = [0, 3], sizes = [2, 1], strides = [1, 1]} : vector<2x5xf32> to vector<2x1xf32>
    %255 = vector.extract_strided_slice %9 {offsets = [3, 0], sizes = [1, 5], strides = [1, 1]} : vector<5x5xf32> to vector<1x5xf32>
    %256 = vector.broadcast %254 : vector<2x1xf32> to vector<2x5xf32>
    %257 = vector.broadcast %255 : vector<1x5xf32> to vector<2x5xf32>
    %258 = arith.mulf %256, %257 : vector<2x5xf32>
    %259 = arith.addf %253, %258 : vector<2x5xf32>
    %260 = vector.extract_strided_slice %234 {offsets = [0, 4], sizes = [2, 1], strides = [1, 1]} : vector<2x5xf32> to vector<2x1xf32>
    %261 = vector.extract_strided_slice %9 {offsets = [4, 0], sizes = [1, 5], strides = [1, 1]} : vector<5x5xf32> to vector<1x5xf32>
    %262 = vector.broadcast %260 : vector<2x1xf32> to vector<2x5xf32>
    %263 = vector.broadcast %261 : vector<1x5xf32> to vector<2x5xf32>
    %264 = arith.mulf %262, %263 : vector<2x5xf32>
    %265 = arith.addf %259, %264 : vector<2x5xf32>
    %266 = math.tanh %265 : vector<2x5xf32>
    %267 = tpu.concatenate %42, %74, %106, %138, %170, %202, %234, %266 in 0 : vector<2x5xf32>, vector<2x5xf32>, vector<2x5xf32>, vector<2x5xf32>, vector<2x5xf32>, vector<2x5xf32>, vector<2x5xf32>, vector<2x5xf32> -> vector<16x5xf32>
    %c0_10 = arith.constant 0 : index
    %c0_11 = arith.constant 0 : index
    %268 = vector.load %arg5[%c0_10, %c0_11] : memref<16x5xf32, #tpu.memory_space<vmem>>, vector<16x5xf32>
    tpu.vector_store %arg5[%c0_10, %c0_11], %267 {strides = array<i32>} : memref<16x5xf32, #tpu.memory_space<vmem>>, vector<16x5xf32>,
    %c0_12 = arith.constant 0 : index
    %c0_13 = arith.constant 0 : index
    %269 = vector.load %arg6[%c0_12, %c0_13] : memref<2x5xf32, #tpu.memory_space<vmem>>, vector<2x5xf32>
    tpu.vector_store %arg6[%c0_12, %c0_13], %266 {strides = array<i32>} : memref<2x5xf32, #tpu.memory_space<vmem>>, vector<2x5xf32>,
    return
  }
  func.func @transform_0(%arg0: i32) -> (i32, i32) {
    %c0_i32 = arith.constant 0 : i32
    %c0_i32_0 = arith.constant 0 : i32
    return %arg0, %c0_i32 : i32, i32
  }
  func.func @transform_1(%arg0: i32) -> (i32, i32) {
    %c0_i32 = arith.constant 0 : i32
    %c0_i32_0 = arith.constant 0 : i32
    %c0_i32_1 = arith.constant 0 : i32
    return %c0_i32, %c0_i32_0 : i32, i32
  }
  func.func @transform_2(%arg0: i32) -> (i32, i32) {
    %c0_i32 = arith.constant 0 : i32
    %c0_i32_0 = arith.constant 0 : i32
    %c0_i32_1 = arith.constant 0 : i32
    return %c0_i32, %c0_i32_0 : i32, i32
  }
  func.func @transform_3(%arg0: i32) -> (i32, i32) {
    %c0_i32 = arith.constant 0 : i32
    %c0_i32_0 = arith.constant 0 : i32
    %c0_i32_1 = arith.constant 0 : i32
    return %c0_i32, %c0_i32_0 : i32, i32
  }
  func.func @transform_4(%arg0: i32) -> (i32, i32) {
    %c0_i32 = arith.constant 0 : i32
    %c0_i32_0 = arith.constant 0 : i32
    return %arg0, %c0_i32 : i32, i32
  }
}

</mosaic_0001>

<llo_original>
// kernel: tpu_custom_call.1
$region0: #{tpu_custom_call.1}
  #allocation0 [shape = 'u32[]', space=smem, size = 0x4, offset = 0x4, fixed_abs, tag = 'smem constant byte address 0x4 - core index']
  #allocation1 [shape = 'u32[144,128]{1,0:T(1,128)}', space=vmem, size = 0x12000, scoped, tag = 'internal scratch']
  #allocation2 [shape = 'f32[2,5]{1,0:T(2,128)}', space=vmem, size = 0x400, scoped, tag = 'scratch operand']
  %s0 = inlined_call_operand.vmem [shape: f32[16,4], index: 0, kind: input, shape index: {}]
  %s1 = inlined_call_operand.vmem [shape: f32[4,5], index: 1, kind: input, shape index: {}]
  %s2 = inlined_call_operand.vmem [shape: f32[5,5], index: 2, kind: input, shape index: {}]
  %s3 = inlined_call_operand.vmem [shape: f32[1,5], index: 3, kind: input, shape index: {}]
  %s4 = inlined_call_operand.vmem [shape: f32[16,5], index: 4, kind: output, shape index: {}]
  %s5 = sld [smem:[#allocation0]]
  $region30: #{tpu_custom_call.1} parent=0
    _
  %s7 = ssub.s32 1, %s5
  %s8 = scalar_select 0, %s7, %s5
  // Predicated region
  $region2: #{tpu_custom_call.1} parent=0 // pred_check
    _
  $region3: #{tpu_custom_call.1} parent=0 // pred_check_branch
    %10 = sbr.rel (0) target = $region5
  $region4: #{tpu_custom_call.1} parent=0 // pred_region
    _
  $region5: #{tpu_custom_call.1} parent=0 // pred_fallthru
    _
  // Predicated region
  $region6: #{tpu_custom_call.1} parent=0 // pred_check
    _
  $region7: #{tpu_custom_call.1} parent=0 // pred_check_branch
    %12 = sbr.rel (0) target = $region9
  $region8: #{tpu_custom_call.1} parent=0 // pred_region
    _
  $region9: #{tpu_custom_call.1} parent=0 // pred_fallthru
    _
  // Predicated region
  $region10: #{tpu_custom_call.1} parent=0 // pred_check
    _
  $region11: #{tpu_custom_call.1} parent=0 // pred_check_branch
    %14 = sbr.rel (0) target = $region13
  $region12: #{tpu_custom_call.1} parent=0 // pred_region
    _
  $region13: #{tpu_custom_call.1} parent=0 // pred_fallthru
    _
  // Predicated region
  $region14: #{tpu_custom_call.1} parent=0 // pred_check
    _
  $region15: #{tpu_custom_call.1} parent=0 // pred_check_branch
    %16 = sbr.rel (0) target = $region17
  $region16: #{tpu_custom_call.1} parent=0 // pred_region
    _
  $region17: #{tpu_custom_call.1} parent=0 // pred_fallthru
    _
  %p17 = scmp.eq.s32.totalorder 0, 0
  // Predicated region
  $region18: #{tpu_custom_call.1} parent=0 // pred_check
    %p18 = pneg %p17
  $region19: #{tpu_custom_call.1} parent=0 // pred_check_branch
    %20 = sbr.rel (%p18) target = $region21
  $region20: #{tpu_custom_call.1} parent=0 // pred_region
    %vm21 = vcmask 33792
    %22 = vst.msk [vmem:[#allocation2] sm:$0x3] %vm21, 0.0
  $region21: #{tpu_custom_call.1} parent=0 // pred_fallthru
    _
  %v23 = vld [vmem:[%s0] sm:$0xff]
  %v24 = vld [vmem:[%s0 + $0x8] sm:$0xff]
  %v25 = vld [vmem:[%s1] sm:$0xf]
  %v26 = vld [vmem:[%s3] sm:$0x1]
  %v28 = vlaneseq
  %v29 = vshrl.u32 %v28, 7
  %v30 = vsub.s32 0, %v29
  %v31 = vrot.slane %v26, %v30
  %vm33 = vcmask 31744
  %v35 = vsel %vm33, %v23, 0
  %v38 = vsel %vm33, %v24, 0
  %vm40 = vcmask 1043456
  %v42 = vsel %vm40, %v25, 0
  %44 = vmatprep.subr.mxu0 0.0
  %45 = vmatpush1.msra.mxu0 0.0
  %46 = vmatprep.subr.mxu0 0.0
  %47 = vmatpush1.msra.mxu0 0.0
  %48 = vmatprep.subr.mxu0 0.0
  %49 = vmatpush1.msra.mxu0 0.0
  %50 = vmatprep.subr.mxu0 0.0
  %51 = vmatpush1.msra.mxu0 0.0
  %52 = vmatprep.subr.mxu0 0.0
  %53 = vmatpush1.msra.mxu0 0.0
  %54 = vmatprep.subr.mxu0 0.0
  %55 = vmatpush1.msra.mxu0 0.0
  %56 = vmatprep.subr.mxu0 0.0
  %57 = vmatpush1.msra.mxu0 0.0
  %58 = vmatprep.subr.mxu0 0.0
  %59 = vmatpush1.msra.mxu0 0.0
  %60 = vmatprep.subr.mxu0 0.0
  %61 = vmatpush1.msra.mxu0 0.0
  %62 = vmatprep.subr.mxu0 0.0
  %63 = vmatpush1.msra.mxu0 0.0
  %64 = vmatprep.subr.mxu0 0.0
  %65 = vmatpush1.msra.mxu0 0.0
  %66 = vmatprep.subr.mxu0 0.0
  %67 = vmatpush1.msra.mxu0 0.0
  %68 = vmatprep.subr.mxu0 0.0
  %69 = vmatpush1.msra.mxu0 0.0
  %70 = vmatprep.subr.mxu0 0.0
  %71 = vmatpush1.msra.mxu0 0.0
  %72 = vmatprep.subr.mxu0 0.0
  %73 = vmatpush1.msra.mxu0 0.0
  %74 = vmatprep.subr.mxu0 0.0
  %75 = vmatpush1.msra.mxu0 %v42
  %76 = vmatprep.subr.mxu0 0.0
  %77 = vmatpush2.msra.mxu0 0.0
  %78 = vmatprep.subr.mxu0 0.0
  %79 = vmatpush2.msra.mxu0 0.0
  %80 = vmatprep.subr.mxu0 0.0
  %81 = vmatpush2.msra.mxu0 0.0
  %82 = vmatprep.subr.mxu0 0.0
  %83 = vmatpush2.msra.mxu0 0.0
  %84 = vmatprep.subr.mxu0 0.0
  %85 = vmatpush2.msra.mxu0 0.0
  %86 = vmatprep.subr.mxu0 0.0
  %87 = vmatpush2.msra.mxu0 0.0
  %88 = vmatprep.subr.mxu0 0.0
  %89 = vmatpush2.msra.mxu0 0.0
  %90 = vmatprep.subr.mxu0 0.0
  %91 = vmatpush2.msra.mxu0 0.0
  %92 = vmatprep.subr.mxu0 0.0
  %93 = vmatpush2.msra.mxu0 0.0
  %94 = vmatprep.subr.mxu0 0.0
  %95 = vmatpush2.msra.mxu0 0.0
  %96 = vmatprep.subr.mxu0 0.0
  %97 = vmatpush2.msra.mxu0 0.0
  %98 = vmatprep.subr.mxu0 0.0
  %99 = vmatpush2.msra.mxu0 0.0
  %100 = vmatprep.subr.mxu0 0.0
  %101 = vmatpush2.msra.mxu0 0.0
  %102 = vmatprep.subr.mxu0 0.0
  %103 = vmatpush2.msra.mxu0 0.0
  %104 = vmatprep.subr.mxu0 0.0
  %105 = vmatpush2.msra.mxu0 0.0
  %106 = vmatprep.subr.mxu0 0.0
  %107 = vmatpush2.msra.mxu0 0.0
  %108 = vmatprep.mubr.f32.mxu0 0.0
  %109 = vmatmul.mubr.f32.gmra.mxu0 %v35
  %v110 = vpop.f32.mrf.mxu0
  %v111 = vadd.f32 %v31, %v110
  %v112 = vpop.f32.mrf.mxu0
  %113 = vmatprep.mubr.f32.mxu0 0.0
  %114 = vmatmul.mubr.f32.gmra.mxu0 %v38
  %v115 = vpop.f32.mrf.mxu0
  %v116 = vadd.f32 %v31, %v115
  %v117 = vpop.f32.mrf.mxu0
  %118 = vdwg.mxu0
  %v119 = vld [vmem:[%s2] sm:$0x1f]
  %v120 = vld [vmem:[#allocation2] sm:$0x3]
  %122 = vset.pattern.permute.xlu0 0
  %123 = vperm.xlu0 %122, %v120
  %v124 = vpop.permute.xlu0 %123
  %v126 = vlaneseq
  %v127 = vshrl.u32 %v126, 7
  %v128 = vsub.s32 0, %v127
  %v129 = vrot.slane %v119, %v128
  %v130 = vmul.f32 %v124, %v129
  %v131 = vadd.f32 %v111, %v130
  %132 = vset.pattern.permute.xlu0 1
  %133 = vperm.xlu0 %132, %v120
  %v134 = vpop.permute.xlu0 %133
  %v136 = vlaneseq
  %v137 = vshrl.u32 %v136, 7
  %v138 = vsub.s32 1, %v137
  %v139 = vrot.slane %v119, %v138
  %v140 = vmul.f32 %v134, %v139
  %v141 = vadd.f32 %v131, %v140
  %142 = vset.pattern.permute.xlu0 2
  %143 = vperm.xlu0 %142, %v120
  %v144 = vpop.permute.xlu0 %143
  %v146 = vlaneseq
  %v147 = vshrl.u32 %v146, 7
  %v148 = vsub.s32 2, %v147
  %v149 = vrot.slane %v119, %v148
  %v150 = vmul.f32 %v144, %v149
  %v151 = vadd.f32 %v141, %v150
  %152 = vset.pattern.permute.xlu0 3
  %153 = vperm.xlu0 %152, %v120
  %v154 = vpop.permute.xlu0 %153
  %v156 = vlaneseq
  %v157 = vshrl.u32 %v156, 7
  %v158 = vsub.s32 3, %v157
  %v159 = vrot.slane %v119, %v158
  %v160 = vmul.f32 %v154, %v159
  %v161 = vadd.f32 %v151, %v160
  %162 = vset.pattern.permute.xlu0 4
  %163 = vperm.xlu0 %162, %v120
  %v164 = vpop.permute.xlu0 %163
  %v166 = vlaneseq
  %v167 = vshrl.u32 %v166, 7
  %v168 = vsub.s32 4, %v167
  %v169 = vrot.slane %v119, %v168
  %v170 = vmul.f32 %v164, %v169
  %v171 = vadd.f32 %v161, %v170
  %v172 = vtanh.pop %v171
  %174 = vset.pattern.permute.xlu0 0
  %175 = vperm.xlu0 %174, %v172
  %v176 = vpop.permute.xlu0 %175
  %v178 = vmul.f32 %v176, %v129
  %v180 = vrot.slane %v178, 6
  %v182 = vadd.f32 %v111, %v180
  %183 = vset.pattern.permute.xlu0 1
  %184 = vperm.xlu0 %183, %v172
  %v185 = vpop.permute.xlu0 %184
  %v187 = vmul.f32 %v185, %v139
  %v189 = vrot.slane %v187, 6
  %v191 = vadd.f32 %v182, %v189
  %192 = vset.pattern.permute.xlu0 2
  %193 = vperm.xlu0 %192, %v172
  %v194 = vpop.permute.xlu0 %193
  %v196 = vmul.f32 %v194, %v149
  %v198 = vrot.slane %v196, 6
  %v200 = vadd.f32 %v191, %v198
  %201 = vset.pattern.permute.xlu0 3
  %202 = vperm.xlu0 %201, %v172
  %v203 = vpop.permute.xlu0 %202
  %v205 = vmul.f32 %v203, %v159
  %v207 = vrot.slane %v205, 6
  %v209 = vadd.f32 %v200, %v207
  %210 = vset.pattern.permute.xlu0 4
  %211 = vperm.xlu0 %210, %v172
  %v212 = vpop.permute.xlu0 %211
  %v214 = vmul.f32 %v212, %v169
  %v216 = vrot.slane %v214, 6
  %v218 = vadd.f32 %v209, %v216
  %v219 = vtanh.pop %v218
  %221 = vset.pattern.permute.xlu0 0
  %222 = vperm.xlu0 %221, %v219
  %v223 = vpop.permute.xlu0 %222
  %v225 = vmul.f32 %v223, %v129
  %v227 = vrot.slane %v225, 6
  %v229 = vadd.f32 %v111, %v227
  %230 = vset.pattern.permute.xlu0 1
  %231 = vperm.xlu0 %230, %v219
  %v232 = vpop.permute.xlu0 %231
  %v234 = vmul.f32 %v232, %v139
  %v236 = vrot.slane %v234, 6
  %v238 = vadd.f32 %v229, %v236
  %239 = vset.pattern.permute.xlu0 2
  %240 = vperm.xlu0 %239, %v219
  %v241 = vpop.permute.xlu0 %240
  %v243 = vmul.f32 %v241, %v149
  %v245 = vrot.slane %v243, 6
  %v247 = vadd.f32 %v238, %v245
  %248 = vset.pattern.permute.xlu0 3
  %249 = vperm.xlu0 %248, %v219
  %v250 = vpop.permute.xlu0 %249
  %v252 = vmul.f32 %v250, %v159
  %v254 = vrot.slane %v252, 6
  %v256 = vadd.f32 %v247, %v254
  %257 = vset.pattern.permute.xlu0 4
  %258 = vperm.xlu0 %257, %v219
  %v259 = vpop.permute.xlu0 %258
  %v261 = vmul.f32 %v259, %v169
  %v263 = vrot.slane %v261, 6
  %v265 = vadd.f32 %v256, %v263
  %v266 = vtanh.pop %v265
  %268 = vset.pattern.permute.xlu0 0
  %269 = vperm.xlu0 %268, %v266
  %v270 = vpop.permute.xlu0 %269
  %v272 = vmul.f32 %v270, %v129
  %v274 = vrot.slane %v272, 6
  %v276 = vadd.f32 %v111, %v274
  %277 = vset.pattern.permute.xlu0 1
  %278 = vperm.xlu0 %277, %v266
  %v279 = vpop.permute.xlu0 %278
  %v281 = vmul.f32 %v279, %v139
  %v283 = vrot.slane %v281, 6
  %v285 = vadd.f32 %v276, %v283
  %286 = vset.pattern.permute.xlu0 2
  %287 = vperm.xlu0 %286, %v266
  %v288 = vpop.permute.xlu0 %287
  %v290 = vmul.f32 %v288, %v149
  %v292 = vrot.slane %v290, 6
  %v294 = vadd.f32 %v285, %v292
  %295 = vset.pattern.permute.xlu0 3
  %296 = vperm.xlu0 %295, %v266
  %v297 = vpop.permute.xlu0 %296
  %v299 = vmul.f32 %v297, %v159
  %v301 = vrot.slane %v299, 6
  %v303 = vadd.f32 %v294, %v301
  %304 = vset.pattern.permute.xlu0 4
  %305 = vperm.xlu0 %304, %v266
  %v306 = vpop.permute.xlu0 %305
  %v308 = vmul.f32 %v306, %v169
  %v310 = vrot.slane %v308, 6
  %v312 = vadd.f32 %v303, %v310
  %v313 = vtanh.pop %v312
  %315 = vset.pattern.permute.xlu0 0
  %316 = vperm.xlu0 %315, %v313
  %v317 = vpop.permute.xlu0 %316
  %v319 = vmul.f32 %v317, %v129
  %v321 = vrot.slane %v319, 6
  %v323 = vadd.f32 %v116, %v321
  %324 = vset.pattern.permute.xlu0 1
  %325 = vperm.xlu0 %324, %v313
  %v326 = vpop.permute.xlu0 %325
  %v328 = vmul.f32 %v326, %v139
  %v330 = vrot.slane %v328, 6
  %v332 = vadd.f32 %v323, %v330
  %333 = vset.pattern.permute.xlu0 2
  %334 = vperm.xlu0 %333, %v313
  %v335 = vpop.permute.xlu0 %334
  %v337 = vmul.f32 %v335, %v149
  %v339 = vrot.slane %v337, 6
  %v341 = vadd.f32 %v332, %v339
  %342 = vset.pattern.permute.xlu0 3
  %343 = vperm.xlu0 %342, %v313
  %v344 = vpop.permute.xlu0 %343
  %v346 = vmul.f32 %v344, %v159
  %v348 = vrot.slane %v346, 6
  %v350 = vadd.f32 %v341, %v348
  %351 = vset.pattern.permute.xlu0 4
  %352 = vperm.xlu0 %351, %v313
  %v353 = vpop.permute.xlu0 %352
  %v355 = vmul.f32 %v353, %v169
  %v357 = vrot.slane %v355, 6
  %v359 = vadd.f32 %v350, %v357
  %v360 = vtanh.pop %v359
  %362 = vset.pattern.permute.xlu0 0
  %363 = vperm.xlu0 %362, %v360
  %v364 = vpop.permute.xlu0 %363
  %v366 = vmul.f32 %v364, %v129
  %v368 = vrot.slane %v366, 6
  %v370 = vadd.f32 %v116, %v368
  %371 = vset.pattern.permute.xlu0 1
  %372 = vperm.xlu0 %371, %v360
  %v373 = vpop.permute.xlu0 %372
  %v375 = vmul.f32 %v373, %v139
  %v377 = vrot.slane %v375, 6
  %v379 = vadd.f32 %v370, %v377
  %380 = vset.pattern.permute.xlu0 2
  %381 = vperm.xlu0 %380, %v360
  %v382 = vpop.permute.xlu0 %381
  %v384 = vmul.f32 %v382, %v149
  %v386 = vrot.slane %v384, 6
  %v388 = vadd.f32 %v379, %v386
  %389 = vset.pattern.permute.xlu0 3
  %390 = vperm.xlu0 %389, %v360
  %v391 = vpop.permute.xlu0 %390
  %v393 = vmul.f32 %v391, %v159
  %v395 = vrot.slane %v393, 6
  %v397 = vadd.f32 %v388, %v395
  %398 = vset.pattern.permute.xlu0 4
  %399 = vperm.xlu0 %398, %v360
  %v400 = vpop.permute.xlu0 %399
  %v402 = vmul.f32 %v400, %v169
  %v404 = vrot.slane %v402, 6
  %v406 = vadd.f32 %v397, %v404
  %v407 = vtanh.pop %v406
  %409 = vset.pattern.permute.xlu0 0
  %410 = vperm.xlu0 %409, %v407
  %v411 = vpop.permute.xlu0 %410
  %v413 = vmul.f32 %v411, %v129
  %v415 = vrot.slane %v413, 6
  %v417 = vadd.f32 %v116, %v415
  %418 = vset.pattern.permute.xlu0 1
  %419 = vperm.xlu0 %418, %v407
  %v420 = vpop.permute.xlu0 %419
  %v422 = vmul.f32 %v420, %v139
  %v424 = vrot.slane %v422, 6
  %v426 = vadd.f32 %v417, %v424
  %427 = vset.pattern.permute.xlu0 2
  %428 = vperm.xlu0 %427, %v407
  %v429 = vpop.permute.xlu0 %428
  %v431 = vmul.f32 %v429, %v149
  %v433 = vrot.slane %v431, 6
  %v435 = vadd.f32 %v426, %v433
  %436 = vset.pattern.permute.xlu0 3
  %437 = vperm.xlu0 %436, %v407
  %v438 = vpop.permute.xlu0 %437
  %v440 = vmul.f32 %v438, %v159
  %v442 = vrot.slane %v440, 6
  %v444 = vadd.f32 %v435, %v442
  %445 = vset.pattern.permute.xlu0 4
  %446 = vperm.xlu0 %445, %v407
  %v447 = vpop.permute.xlu0 %446
  %v449 = vmul.f32 %v447, %v169
  %v451 = vrot.slane %v449, 6
  %v453 = vadd.f32 %v444, %v451
  %v454 = vtanh.pop %v453
  %456 = vset.pattern.permute.xlu0 0
  %457 = vperm.xlu0 %456, %v454
  %v458 = vpop.permute.xlu0 %457
  %v460 = vmul.f32 %v458, %v129
  %v462 = vrot.slane %v460, 6
  %v464 = vadd.f32 %v116, %v462
  %465 = vset.pattern.permute.xlu0 1
  %466 = vperm.xlu0 %465, %v454
  %v467 = vpop.permute.xlu0 %466
  %v469 = vmul.f32 %v467, %v139
  %v471 = vrot.slane %v469, 6
  %v473 = vadd.f32 %v464, %v471
  %474 = vset.pattern.permute.xlu0 2
  %475 = vperm.xlu0 %474, %v454
  %v476 = vpop.permute.xlu0 %475
  %v478 = vmul.f32 %v476, %v149
  %v480 = vrot.slane %v478, 6
  %v482 = vadd.f32 %v473, %v480
  %483 = vset.pattern.permute.xlu0 3
  %484 = vperm.xlu0 %483, %v454
  %v485 = vpop.permute.xlu0 %484
  %v487 = vmul.f32 %v485, %v159
  %v489 = vrot.slane %v487, 6
  %v491 = vadd.f32 %v482, %v489
  %492 = vset.pattern.permute.xlu0 4
  %493 = vperm.xlu0 %492, %v454
  %v494 = vpop.permute.xlu0 %493
  %v496 = vmul.f32 %v494, %v169
  %v498 = vrot.slane %v496, 6
  %v500 = vadd.f32 %v491, %v498
  %v501 = vtanh.pop %v500
  %vm502 = vcmask 1041408
  %v503 = vsel %vm502, %v172, %v219
  %v504 = vsel %vm40, %v503, %v266
  %vm505 = vcmask 1045504
  %v506 = vsel %vm505, %v504, %v313
  %v507 = vsel %vm502, %v360, %v407
  %v508 = vsel %vm40, %v507, %v454
  %v509 = vsel %vm505, %v508, %v501
  %vm510 = vcmask 39936
  %511 = vst.msk [vmem:[%s4] sm:$0xff] %vm510, %v506
  %512 = vst.msk [vmem:[%s4 + $0x8] sm:$0xff] %vm510, %v509
  %vm513 = vcmask 39942
  %514 = vst.msk [vmem:[#allocation2 - $0x6] sm:$0xc0] %vm513, %v501
  // Predicated region
  $region22: #{tpu_custom_call.1} parent=0 // pred_check
    _
  $region23: #{tpu_custom_call.1} parent=0 // pred_check_branch
    %516 = sbr.rel (0) target = $region25
  $region24: #{tpu_custom_call.1} parent=0 // pred_region
    _
  $region25: #{tpu_custom_call.1} parent=0 // pred_fallthru
    _
  // Predicated region
  $region26: #{tpu_custom_call.1} parent=0 // pred_check
    _
  $region27: #{tpu_custom_call.1} parent=0 // pred_check_branch
    %518 = sbr.rel (0) target = $region29
  $region28: #{tpu_custom_call.1} parent=0 // pred_region
    _
  $region29: #{tpu_custom_call.1} parent=0 // pred_fallthru
    _

</llo_original>
